<compile_context>
chip_gen: v6e
topology: v6e:2x2x1
jax: 0.10.0
libtpu: 0.0.40
codegen_flags: <defaults>
</compile_context>

<pallas_src>
import jax
import jax.numpy as jnp
from jax.experimental import pallas as pl
from jax.experimental.pallas import tpu as pltpu

EPS = 1e-12


def _round_up(x, m):
    return ((x + m - 1) // m) * m


def bert_avg_kernel(h_ref, m_ref, o_ref):
    # h_ref: (TB, S, H)  hidden tile (native dtype, e.g. bf16 or f32)
    # m_ref: (TB, 1, S)  attention-mask tile
    # o_ref: (TB, H)     masked-average output tile
    h = h_ref[...]
    m = m_ref[...]
    # Masked sum over S on the MXU, accumulated in f32 (same batched-matmul pattern
    # as the flash-attention p@v einsum, with q == 1).
    num = jnp.einsum(
        "bqs,bsh->bqh",
        m.astype(h.dtype),
        h,
        preferred_element_type=jnp.float32,
    )[:, 0, :]                                          # (TB, H)
    den = jnp.sum(m.astype(jnp.float32), axis=2)        # (TB, 1)  token count per row
    inv = pl.reciprocal(den + EPS, approx=True)         # EUP slot, frees VALU
    o_ref[...] = (num * inv).astype(o_ref.dtype)


def _pick_batch_tile(B, S, H, itemsize, target_block_bytes=6 << 20, max_tb=1024):
    """Rows per grid step: hidden block ~target_block_bytes, sublane-aligned."""
    bytes_per_row = max(1, S * H * itemsize)
    tb = max(1, min(B, max_tb, target_block_bytes // bytes_per_row))
    if tb < B:
        # Partial batch tiling: keep the (TB, H) output block sublane-aligned.
        tb = min(max(8, (tb // 8) * 8), B)
    return int(tb)


def bert_avg(hidden_states, attention_mask):
    B, S, H = hidden_states.shape
    assert attention_mask.shape == (B, S)

    h_isz = jnp.dtype(hidden_states.dtype).itemsize
    m_isz = jnp.dtype(attention_mask.dtype).itemsize
    tb = _pick_batch_tile(B, S, H, h_isz)
    grid_b = pl.cdiv(B, tb)

    # Mask fed as (B, 1, S) so the in-kernel contraction is a clean batched matmul.
    mask3 = attention_mask.reshape(B, 1, S)

    # Scoped-VMEM budget: double-buffered hidden + (padded) mask + output, plus slack.
    hid_block = tb * S * H * h_isz
    mask_block = tb * 8 * _round_up(S, 128) * m_isz
    out_block = _round_up(tb, 8) * _round_up(H, 128) * h_isz
    vmem_limit = max(32 << 20, 2 * (hid_block + mask_block + out_block) + (2 << 20))

    return pl.pallas_call(
        bert_avg_kernel,
        out_shape=jax.ShapeDtypeStruct((B, H), hidden_states.dtype),
        grid_spec=pltpu.PrefetchScalarGridSpec(
            num_scalar_prefetch=0,
            grid=(grid_b,),
            in_specs=[
                pl.BlockSpec((tb, S, H), lambda b: (b, 0, 0)),
                pl.BlockSpec((tb, 1, S), lambda b: (b, 0, 0)),
            ],
            out_specs=pl.BlockSpec((tb, H), lambda b: (b, 0)),
        ),
        compiler_params=pltpu.CompilerParams(
            dimension_semantics=("parallel",),
            vmem_limit_bytes=int(vmem_limit),
        ),
    )(hidden_states, mask3)


if __name__ == "__main__":
    key = jax.random.PRNGKey(0)
    k_h, _ = jax.random.split(key)

    B, S, H = 2, 8, 32
    hidden_states = jax.random.normal(k_h, (B, S, H), dtype=jnp.float32)
    # deterministic mask: first few tokens valid per batch element
    lengths = jnp.array([5, 8], dtype=jnp.int32)
    attention_mask = (jnp.arange(S)[None, :] < lengths[:, None]).astype(jnp.float32)

    out = bert_avg(hidden_states, attention_mask)
    out = jax.block_until_ready(out)

    # pure-JAX reference (matches the PyTorch module)
    ref = jnp.sum(hidden_states * attention_mask[..., None], axis=1) / (
        jnp.sum(attention_mask, axis=1, keepdims=True) + EPS
    )
    assert out.shape == (B, H)
    # tolerance accounts for the approximate-reciprocal epilogue
    assert jnp.allclose(out, ref, atol=2e-3, rtol=2e-3), float(jnp.max(jnp.abs(out - ref)))

    print("KERNEL_OK")
</pallas_src>

<mosaic_0001>
module attributes {stable_mosaic.version = 11 : i64} {
  func.func @bert_avg_kernel(%arg0: i32, %arg1: memref<2x8x32xf32, #tpu.memory_space<vmem>>, %arg2: memref<2x1x8xf32, #tpu.memory_space<vmem>>, %arg3: memref<2x32xf32, #tpu.memory_space<vmem>>) attributes {dimension_semantics = [#tpu.dimension_semantics<parallel>], iteration_bounds = array<i64: 1>, scalar_prefetch = 0 : i64, scratch_operands = 0 : i64, tpu.core_type = #tpu.core_type<tc>, window_params = [{transform_indices = @transform_0, window_bounds = array<i64: 2, 8, 32>}, {transform_indices = @transform_1, window_bounds = array<i64: 2, 1, 8>}, {transform_indices = @transform_2, window_bounds = array<i64: 2, 32>}]} {
    %c0 = arith.constant 0 : index
    %c0_0 = arith.constant 0 : index
    %c0_1 = arith.constant 0 : index
    %0 = vector.load %arg1[%c0, %c0_0, %c0_1] : memref<2x8x32xf32, #tpu.memory_space<vmem>>, vector<2x8x32xf32>
    %c0_2 = arith.constant 0 : index
    %c0_3 = arith.constant 0 : index
    %c0_4 = arith.constant 0 : index
    %1 = vector.load %arg2[%c0_2, %c0_3, %c0_4] : memref<2x1x8xf32, #tpu.memory_space<vmem>>, vector<2x1x8xf32>
    "tpu.trace_start"() <{level = 10 : i32, message = "bqs,bsh->bqh"}> : () -> ()
    %cst = arith.constant dense<0.000000e+00> : vector<2x1x32xf32>
    %2 = tpu.matmul %1, %0, %cst {dimension_numbers = #tpu.dot_dimension_numbers<[2], [1], [1], [2], [0, 0, 0, 1, 1, 2], [0], [0]>} : vector<2x1x8xf32>, vector<2x8x32xf32>, vector<2x1x32xf32> -> vector<2x1x32xf32>
    "tpu.trace_stop"() : () -> ()
    %3 = vector.shape_cast %2 : vector<2x1x32xf32> to vector<2x32xf32>
    %cst_5 = arith.constant dense<0.000000e+00> : vector<2x1xf32>
    %4 = vector.multi_reduction <add>, %1, %cst_5 [2] : vector<2x1x8xf32> to vector<2x1xf32>
    %cst_6 = arith.constant 9.99999996E-13 : f32
    %5 = vector.broadcast %cst_6 : f32 to vector<2x1xf32>
    %6 = arith.addf %4, %5 : vector<2x1xf32>
    %7 = tpu.reciprocal %6 {approx = true} : vector<2x1xf32> -> vector<2x1xf32>
    %8 = vector.broadcast %7 : vector<2x1xf32> to vector<2x32xf32>
    %9 = arith.mulf %3, %8 : vector<2x32xf32>
    %c0_7 = arith.constant 0 : index
    %c0_8 = arith.constant 0 : index
    %10 = vector.load %arg3[%c0_7, %c0_8] : memref<2x32xf32, #tpu.memory_space<vmem>>, vector<2x32xf32>
    tpu.vector_store %arg3[%c0_7, %c0_8], %9 {strides = array<i32>} : memref<2x32xf32, #tpu.memory_space<vmem>>, vector<2x32xf32>,
    return
  }
  func.func @transform_0(%arg0: i32) -> (i32, i32, i32) {
    %c0_i32 = arith.constant 0 : i32
    %c0_i32_0 = arith.constant 0 : i32
    %c0_i32_1 = arith.constant 0 : i32
    return %arg0, %c0_i32, %c0_i32_0 : i32, i32, i32
  }
  func.func @transform_1(%arg0: i32) -> (i32, i32, i32) {
    %c0_i32 = arith.constant 0 : i32
    %c0_i32_0 = arith.constant 0 : i32
    %c0_i32_1 = arith.constant 0 : i32
    return %arg0, %c0_i32, %c0_i32_0 : i32, i32, i32
  }
  func.func @transform_2(%arg0: i32) -> (i32, i32) {
    %c0_i32 = arith.constant 0 : i32
    %c0_i32_0 = arith.constant 0 : i32
    return %arg0, %c0_i32 : i32, i32
  }
}

</mosaic_0001>

<llo_original>
// kernel: tpu_custom_call.1
$region0: #{tpu_custom_call.1}
  #allocation0 [shape = 'u32[]', space=smem, size = 0x4, offset = 0x4, fixed_abs, tag = 'smem constant byte address 0x4 - core index']
  #allocation1 [shape = 'u32[144,128]{1,0:T(1,128)}', space=vmem, size = 0x12000, scoped, tag = 'internal scratch']
  %s0 = inlined_call_operand.hbm [shape: f32[2,8,32], index: 0, kind: input, shape index: {}]
  %s1 = inlined_call_operand.hbm [shape: f32[2,1,8], index: 1, kind: input, shape index: {}]
  %s2 = inlined_call_operand.hbm [shape: f32[2,32], index: 2, kind: output, shape index: {}]
  %s3 = sld [smem:[#allocation0]]
  $region26: #{tpu_custom_call.1} parent=0
    _
  %s5 = ssub.s32 1, %s3
  %s6 = scalar_select 0, %s5, %s3
  $region1: #{tpu_custom_call.1} parent=0
    #allocation2 [shape = 'u8[8192]{0}', space=vmem, size = 0x2000, scoped, tag = 'input window, operand 0, single buffered']
    #allocation3 [shape = 's32[1]{0}', space=sflag, size = 0x4, scoped, tag = 'scoped memory for tpu_custom_call.1']
    #allocation4 [shape = 's32[1]{0}', space=sflag, size = 0x4, scoped, tag = 'scoped memory for tpu_custom_call.1']
    #allocation5 [shape = 'u8[1024]{0}', space=vmem, size = 0x400, scoped, tag = 'input window, operand 1, single buffered']
    #allocation6 [shape = 's32[1]{0}', space=sflag, size = 0x4, scoped, tag = 'scoped memory for tpu_custom_call.1']
    #allocation7 [shape = 'u8[1024]{0}', space=vmem, size = 0x400, scoped, tag = 'output window, operand 0, single buffered']
    %7 = vsyncpa [#allocation3], 0
    %8 = vsyncpa [#allocation6], 0
    %9 = vsyncpa [#allocation4], 0
    // Predicated region
    $region2: #{tpu_custom_call.1} parent=1 // pred_check
      _
    $region3: #{tpu_custom_call.1} parent=1 // pred_check_branch
      %11 = sbr.rel (0) target = $region5
    $region4: #{tpu_custom_call.1} parent=1 // pred_region
      %s13 = ssub.s32 256, 256
      %14 = vsyncadd [#allocation3], %s13
      %s15 = sshll.u32 [#allocation2], 4
      %s16 = int_to_ptr.vmem [resolvable:$true] %s15
      %21 = dma.hbm_to_vmem [thread:$0]  %s0, 256, %s16, [#allocation3], 128, 128, 8
    $region5: #{tpu_custom_call.1} parent=1 // pred_fallthru
      _
    // Predicated region
    $region6: #{tpu_custom_call.1} parent=1 // pred_check
      _
    $region7: #{tpu_custom_call.1} parent=1 // pred_check_branch
      %23 = sbr.rel (0) target = $region9
    $region8: #{tpu_custom_call.1} parent=1 // pred_region
      %s25 = ssub.s32 32, 32
      %26 = vsyncadd [#allocation6], %s25
      %s27 = sshll.u32 [#allocation5], 4
      %s28 = int_to_ptr.vmem [resolvable:$true] %s27
      %33 = dma.hbm_to_vmem [thread:$0]  %s1, 32, %s28, [#allocation6], 16, 16, 1
    $region9: #{tpu_custom_call.1} parent=1 // pred_fallthru
      _
    // Predicated region
    $region10: #{tpu_custom_call.1} parent=1 // pred_check
      _
    $region11: #{tpu_custom_call.1} parent=1 // pred_check_branch
      %35 = sbr.rel (0) target = $region13
    $region12: #{tpu_custom_call.1} parent=1 // pred_region
      %36 = dma.done [#allocation3], 256
    $region13: #{tpu_custom_call.1} parent=1 // pred_fallthru
      _
    // Predicated region
    $region14: #{tpu_custom_call.1} parent=1 // pred_check
      _
    $region15: #{tpu_custom_call.1} parent=1 // pred_check_branch
      %38 = sbr.rel (0) target = $region17
    $region16: #{tpu_custom_call.1} parent=1 // pred_region
      %39 = dma.done [#allocation6], 32
    $region17: #{tpu_custom_call.1} parent=1 // pred_fallthru
      _
    %v40 = vld [vmem:[#allocation2] sm:$0xff]
    %v41 = vld [vmem:[#allocation2 + $0x8] sm:$0xff]
    %v42 = vld [vmem:[#allocation5] sm:$0x1]
    %v43 = vld [vmem:[#allocation5 + $0x1] sm:$0x1]
    %vm44 = vcmask 64512
    %v46 = vsel %vm44, %v42, 0
    %48 = vmatprep.subr.mxu0 0.0
    %49 = vmatpush1.msra.mxu0 0.0
    %50 = vmatprep.subr.mxu0 0.0
    %51 = vmatpush1.msra.mxu0 0.0
    %52 = vmatprep.subr.mxu0 0.0
    %53 = vmatpush1.msra.mxu0 0.0
    %54 = vmatprep.subr.mxu0 0.0
    %55 = vmatpush1.msra.mxu0 0.0
    %56 = vmatprep.subr.mxu0 0.0
    %57 = vmatpush1.msra.mxu0 0.0
    %58 = vmatprep.subr.mxu0 0.0
    %59 = vmatpush1.msra.mxu0 0.0
    %60 = vmatprep.subr.mxu0 0.0
    %61 = vmatpush1.msra.mxu0 0.0
    %62 = vmatprep.subr.mxu0 0.0
    %63 = vmatpush1.msra.mxu0 0.0
    %64 = vmatprep.subr.mxu0 0.0
    %65 = vmatpush1.msra.mxu0 0.0
    %66 = vmatprep.subr.mxu0 0.0
    %67 = vmatpush1.msra.mxu0 0.0
    %68 = vmatprep.subr.mxu0 0.0
    %69 = vmatpush1.msra.mxu0 0.0
    %70 = vmatprep.subr.mxu0 0.0
    %71 = vmatpush1.msra.mxu0 0.0
    %72 = vmatprep.subr.mxu0 0.0
    %73 = vmatpush1.msra.mxu0 0.0
    %74 = vmatprep.subr.mxu0 0.0
    %75 = vmatpush1.msra.mxu0 0.0
    %76 = vmatprep.subr.mxu0 0.0
    %77 = vmatpush1.msra.mxu0 0.0
    %78 = vmatprep.subr.mxu0 0.0
    %79 = vmatpush1.msra.mxu0 %v40
    %80 = vmatprep.subr.mxu0 0.0
    %81 = vmatpush2.msra.mxu0 0.0
    %82 = vmatprep.subr.mxu0 0.0
    %83 = vmatpush2.msra.mxu0 0.0
    %84 = vmatprep.subr.mxu0 0.0
    %85 = vmatpush2.msra.mxu0 0.0
    %86 = vmatprep.subr.mxu0 0.0
    %87 = vmatpush2.msra.mxu0 0.0
    %88 = vmatprep.subr.mxu0 0.0
    %89 = vmatpush2.msra.mxu0 0.0
    %90 = vmatprep.subr.mxu0 0.0
    %91 = vmatpush2.msra.mxu0 0.0
    %92 = vmatprep.subr.mxu0 0.0
    %93 = vmatpush2.msra.mxu0 0.0
    %94 = vmatprep.subr.mxu0 0.0
    %95 = vmatpush2.msra.mxu0 0.0
    %96 = vmatprep.subr.mxu0 0.0
    %97 = vmatpush2.msra.mxu0 0.0
    %98 = vmatprep.subr.mxu0 0.0
    %99 = vmatpush2.msra.mxu0 0.0
    %100 = vmatprep.subr.mxu0 0.0
    %101 = vmatpush2.msra.mxu0 0.0
    %102 = vmatprep.subr.mxu0 0.0
    %103 = vmatpush2.msra.mxu0 0.0
    %104 = vmatprep.subr.mxu0 0.0
    %105 = vmatpush2.msra.mxu0 0.0
    %106 = vmatprep.subr.mxu0 0.0
    %107 = vmatpush2.msra.mxu0 0.0
    %108 = vmatprep.subr.mxu0 0.0
    %109 = vmatpush2.msra.mxu0 0.0
    %110 = vmatprep.subr.mxu0 0.0
    %111 = vmatpush2.msra.mxu0 0.0
    %112 = vmatprep.mubr.f32.mxu0 0.0
    %113 = vmatmul.mubr.f32.gmra.mxu0 %v46
    %v114 = vpop.f32.mrf.mxu0
    %v115 = vadd.f32 0.0, %v114
    %v116 = vpop.f32.mrf.mxu0
    %117 = vdwg.mxu0
    %v119 = vsel %vm44, %v43, 0
    %121 = vmatprep.subr.mxu0 0.0
    %122 = vmatpush1.msra.mxu0 0.0
    %123 = vmatprep.subr.mxu0 0.0
    %124 = vmatpush1.msra.mxu0 0.0
    %125 = vmatprep.subr.mxu0 0.0
    %126 = vmatpush1.msra.mxu0 0.0
    %127 = vmatprep.subr.mxu0 0.0
    %128 = vmatpush1.msra.mxu0 0.0
    %129 = vmatprep.subr.mxu0 0.0
    %130 = vmatpush1.msra.mxu0 0.0
    %131 = vmatprep.subr.mxu0 0.0
    %132 = vmatpush1.msra.mxu0 0.0
    %133 = vmatprep.subr.mxu0 0.0
    %134 = vmatpush1.msra.mxu0 0.0
    %135 = vmatprep.subr.mxu0 0.0
    %136 = vmatpush1.msra.mxu0 0.0
    %137 = vmatprep.subr.mxu0 0.0
    %138 = vmatpush1.msra.mxu0 0.0
    %139 = vmatprep.subr.mxu0 0.0
    %140 = vmatpush1.msra.mxu0 0.0
    %141 = vmatprep.subr.mxu0 0.0
    %142 = vmatpush1.msra.mxu0 0.0
    %143 = vmatprep.subr.mxu0 0.0
    %144 = vmatpush1.msra.mxu0 0.0
    %145 = vmatprep.subr.mxu0 0.0
    %146 = vmatpush1.msra.mxu0 0.0
    %147 = vmatprep.subr.mxu0 0.0
    %148 = vmatpush1.msra.mxu0 0.0
    %149 = vmatprep.subr.mxu0 0.0
    %150 = vmatpush1.msra.mxu0 0.0
    %151 = vmatprep.subr.mxu0 0.0
    %152 = vmatpush1.msra.mxu0 %v41
    %153 = vmatprep.subr.mxu0 0.0
    %154 = vmatpush2.msra.mxu0 0.0
    %155 = vmatprep.subr.mxu0 0.0
    %156 = vmatpush2.msra.mxu0 0.0
    %157 = vmatprep.subr.mxu0 0.0
    %158 = vmatpush2.msra.mxu0 0.0
    %159 = vmatprep.subr.mxu0 0.0
    %160 = vmatpush2.msra.mxu0 0.0
    %161 = vmatprep.subr.mxu0 0.0
    %162 = vmatpush2.msra.mxu0 0.0
    %163 = vmatprep.subr.mxu0 0.0
    %164 = vmatpush2.msra.mxu0 0.0
    %165 = vmatprep.subr.mxu0 0.0
    %166 = vmatpush2.msra.mxu0 0.0
    %167 = vmatprep.subr.mxu0 0.0
    %168 = vmatpush2.msra.mxu0 0.0
    %169 = vmatprep.subr.mxu0 0.0
    %170 = vmatpush2.msra.mxu0 0.0
    %171 = vmatprep.subr.mxu0 0.0
    %172 = vmatpush2.msra.mxu0 0.0
    %173 = vmatprep.subr.mxu0 0.0
    %174 = vmatpush2.msra.mxu0 0.0
    %175 = vmatprep.subr.mxu0 0.0
    %176 = vmatpush2.msra.mxu0 0.0
    %177 = vmatprep.subr.mxu0 0.0
    %178 = vmatpush2.msra.mxu0 0.0
    %179 = vmatprep.subr.mxu0 0.0
    %180 = vmatpush2.msra.mxu0 0.0
    %181 = vmatprep.subr.mxu0 0.0
    %182 = vmatpush2.msra.mxu0 0.0
    %183 = vmatprep.subr.mxu0 0.0
    %184 = vmatpush2.msra.mxu0 0.0
    %185 = vmatprep.mubr.f32.mxu0 0.0
    %186 = vmatmul.mubr.f32.gmra.mxu0 %v119
    %v187 = vpop.f32.mrf.mxu0
    %v188 = vadd.f32 0.0, %v187
    %v189 = vpop.f32.mrf.mxu0
    %190 = vdwg.mxu0
    %vm191 = vcmask 57344
    %v192 = vsel %vm191, %v42, 0.0
    %193 = vadd.xlane.f32.xlu0 %v192
    %v194 = vpop.xlane.xlu0 %193
    %v195 = vsel %vm191, %v43, 0.0
    %196 = vadd.xlane.f32.xlu0 %v195
    %v197 = vpop.xlane.xlu0 %196
    %v198 = vadd.f32 %v194, 1e-12
    %v199 = vadd.f32 %v197, 1e-12
    %v200 = vrcp.pop %v198
    %v201 = vrcp.pop %v199
    %v202 = vlaneseq
    %v203 = vshrl.u32 %v202, 7
    %v204 = vsub.s32 0, %v203
    %v205 = vrot.slane %v200, %v204
    %v206 = vlaneseq
    %v207 = vshrl.u32 %v206, 7
    %v208 = vsub.s32 0, %v207
    %v209 = vrot.slane %v201, %v208
    %v210 = vmul.f32 %v115, %v205
    %v211 = vmul.f32 %v188, %v209
    %v214 = vrot.slane %v211, 7
    %vm215 = vcmask 1041409
    %v216 = vsel %vm215, %v214, %v210
    %vm218 = vcmask 254976
    %219 = vst.msk [vmem:[#allocation7] sm:$0x3] %vm218, %v216
    // Predicated region
    $region18: #{tpu_custom_call.1} parent=1 // pred_check
      _
    $region19: #{tpu_custom_call.1} parent=1 // pred_check_branch
      %221 = sbr.rel (0) target = $region21
    $region20: #{tpu_custom_call.1} parent=1 // pred_region
      %s223 = ssub.s32 32, 32
      %224 = vsyncadd [#allocation4], %s223
      %s226 = sshll.u32 [#allocation7], 4
      %s227 = int_to_ptr.vmem [resolvable:$true] %s226
      %229 = dma.vmem_to_hbm [thread:$0]  %s227, 32, %s2, [#allocation4]
    $region21: #{tpu_custom_call.1} parent=1 // pred_fallthru
      _
    // Predicated region
    $region22: #{tpu_custom_call.1} parent=1 // pred_check
      _
    $region23: #{tpu_custom_call.1} parent=1 // pred_check_branch
      %231 = sbr.rel (0) target = $region25
    $region24: #{tpu_custom_call.1} parent=1 // pred_region
      %232 = dma.done [#allocation4], 32
    $region25: #{tpu_custom_call.1} parent=1 // pred_fallthru
      _
    %233 = vsyncpa [#allocation3], 1
    %234 = vsyncpa [#allocation6], 1
    %235 = vsyncpa [#allocation4], 1

</llo_original>
